<compile_context>
chip_gen: v7x
topology: tpu7x:2x2x1
jax: 0.10.0
libtpu: 0.0.40
codegen_flags: <defaults>
</compile_context>

<pallas_src>
import jax
import jax.numpy as jnp
from jax.experimental import pallas as pl
from jax.experimental.pallas import tpu as pltpu


def _round_up(x: int, m: int) -> int:
    return ((x + m - 1) // m) * m


def _latent_embedding_add_kernel(y_ref, z_ref, emb_ref, o_ref):
    # y_ref:   (TBf, k)        int32   labels for the k sub-rows folded into each lane row
    # z_ref:   (TBf, k*D)      f32     folded latent tile (lane-dense)
    # emb_ref: (k*nlab, k*D)   f32/bf16  block-diagonal table kron(I_k, emb), resident
    # o_ref:   (TBf, k*D)      f32     folded output tile
    tbf, k = y_ref.shape
    kp, _ = emb_ref.shape
    nlab = kp // k  # padded nlabels (static)

    yv = y_ref[...]  # (TBf, k) int32
    col = jax.lax.broadcasted_iota(jnp.int32, (tbf, kp), 1)

    # Multi-hot selector: column j*nlab + y[g, j] is hot for each sub-row j.
    hot = col == yv[:, 0:1]
    for j in range(1, k):
        hot = jnp.logical_or(hot, col == (yv[:, j : j + 1] + j * nlab))

    # Gather via MXU matmul against the (block-diagonal) table.  Table dtype
    # (f32 exact for small class counts, bf16 for large) is decided wrapper-side.
    onehot = hot.astype(emb_ref.dtype)
    yembed = jnp.dot(onehot, emb_ref[...], preferred_element_type=jnp.float32)

    o_ref[...] = (z_ref[...].astype(jnp.float32) + yembed).astype(o_ref.dtype)


def latent_embedding_add(z, y, emb, *, block_rows: int = 1024,
                         bf16_gather_threshold: int = 256):
    """z: (B, D) f32, y: (B,) int, emb: (nlabels, D) f32 -> (B, D) f32."""
    B, D = z.shape
    nlabels, De = emb.shape
    assert De == D and y.shape == (B,)

    # Fold k consecutive batch rows into the lane dimension when D is a small
    # divisor of 128 -> lane-dense (k*D == 128) loads/stores.
    if D < 128 and 128 % D == 0:
        k = 128 // D
    else:
        k = 1
    Dw = k * D
    row_align = 8 * k

    nlabels_p = _round_up(nlabels, 8)
    Bp = _round_up(B, row_align)

    y = y.astype(jnp.int32)
    if Bp != B:
        # Only small alignment padding (< 8*k rows); padded rows select table
        # row 0 and are sliced off afterwards.
        # TODO(synk): handle the ragged last tile in-kernel to avoid this copy.
        z_in = jnp.pad(z, ((0, Bp - B), (0, 0)))
        y_in = jnp.pad(y, (0, Bp - B))
    else:
        z_in, y_in = z, y

    # Build the gather table once, wrapper-side.
    emb_p = emb if nlabels_p == nlabels else jnp.pad(emb, ((0, nlabels_p - nlabels), (0, 0)))
    emb_t = jnp.kron(jnp.eye(k, dtype=emb_p.dtype), emb_p) if k > 1 else emb_p
    if nlabels_p >= bf16_gather_threshold:
        # Large class counts: bf16 MXU path (embedding values bf16-rounded).
        emb_t = emb_t.astype(jnp.bfloat16)
    Kp = emb_t.shape[0]

    # Free row-major reshapes into the folded (lane-dense) view.
    Bf = Bp // k
    zf = z_in.reshape(Bf, Dw)
    yf = y_in.reshape(Bf, k)

    # Tile-size selection: biggest tile that (a) divides Bf, (b) respects a
    # conservative VMEM budget (double-buffered z/out tiles + resident table),
    # safe for v7x's 64 MiB physical VMEM.
    itemsize = jnp.dtype(z.dtype).itemsize
    table_bytes = 2 * Kp * Dw * jnp.dtype(emb_t.dtype).itemsize
    per_row_bytes = 2 * 2 * Dw * itemsize + 2 * k * 4 + Kp * 4  # z+out dbl-buf, y, one-hot temp
    vmem_budget = 40 * 1024 * 1024
    max_rows_by_vmem = max(8, (vmem_budget - table_bytes) // per_row_bytes)

    tbf_target = min(max(block_rows // k, 8), Bf, int(max_rows_by_vmem))
    tbf_target = max(8, (tbf_target // 8) * 8)
    TBf = 8
    d = tbf_target
    while d >= 8:
        if Bf % d == 0:
            TBf = d
            break
        d -= 8
    grid = (Bf // TBf,)

    # Advisory cost: this kernel is bandwidth-dominated; the one-hot matmul is
    # bookkeeping, not real FLOPs.
    cost = pl.CostEstimate(
        flops=2 * Bf * Dw,
        transcendentals=0,
        bytes_accessed=2 * Bf * Dw * itemsize
        + Kp * Dw * jnp.dtype(emb_t.dtype).itemsize
        + Bf * k * 4,
    )

    out = pl.pallas_call(
        _latent_embedding_add_kernel,
        out_shape=jax.ShapeDtypeStruct((Bf, Dw), z.dtype),
        grid_spec=pl.GridSpec(
            grid=grid,
            in_specs=[
                pl.BlockSpec((TBf, k), lambda i: (i, 0)),    # labels tile
                pl.BlockSpec((TBf, Dw), lambda i: (i, 0)),   # folded z tile
                pl.BlockSpec((Kp, Dw), lambda i: (0, 0)),    # full table, resident
            ],
            out_specs=pl.BlockSpec((TBf, Dw), lambda i: (i, 0)),
        ),
        compiler_params=pltpu.CompilerParams(
            dimension_semantics=("parallel",),
            vmem_limit_bytes=48 * 1024 * 1024,
        ),
        cost_estimate=cost,
    )(yf, zf, emb_t)

    out = out.reshape(Bp, D)
    if Bp != B:
        out = out[:B]
    return out


def init_params(key, nlabels, embed_dim):
    """nn.Embedding default init: N(0, 1)."""
    return jax.random.normal(key, (nlabels, embed_dim), jnp.float32)


if __name__ == "__main__":
    key = jax.random.PRNGKey(0)
    kz, ky, ke = jax.random.split(key, 3)

    B, embed_dim, nlabels = 8, 32, 10  # small synthetic shapes
    z = jax.random.normal(kz, (B, embed_dim), jnp.float32)
    y = jax.random.randint(ky, (B,), 0, nlabels, jnp.int32)
    emb = init_params(ke, nlabels, embed_dim)

    out = latent_embedding_add(z, y, emb)
    out = jax.block_until_ready(out)

    # Correctness check against plain-JAX reference of the same math.
    ref = z + emb[y]
    assert out.shape == (B, embed_dim)
    assert jnp.allclose(out, ref, atol=1e-5, rtol=1e-5)

    print("KERNEL_OK")
</pallas_src>

<mosaic_0001>
module attributes {stable_mosaic.version = 11 : i64} {
  func.func @_latent_embedding_add_kernel(%arg0: i32, %arg1: memref<8x4xi32, #tpu.memory_space<vmem>>, %arg2: memref<8x128xf32, #tpu.memory_space<vmem>>, %arg3: memref<64x128xf32, #tpu.memory_space<vmem>>, %arg4: memref<8x128xf32, #tpu.memory_space<vmem>>) attributes {dimension_semantics = [#tpu.dimension_semantics<parallel>], iteration_bounds = array<i64: 1>, scalar_prefetch = 0 : i64, scratch_operands = 0 : i64, tpu.core_type = #tpu.core_type<tc>, window_params = [{transform_indices = @transform_0, window_bounds = array<i64: 8, 4>}, {transform_indices = @transform_1, window_bounds = array<i64: 8, 128>}, {pipeline_mode = #tpu.pipeline_mode<synchronous>, transform_indices = @transform_2, window_bounds = array<i64: 64, 128>}, {transform_indices = @transform_3, window_bounds = array<i64: 8, 128>}]} {
    %c0 = arith.constant 0 : index
    %c0_0 = arith.constant 0 : index
    %0 = vector.load %arg1[%c0, %c0_0] : memref<8x4xi32, #tpu.memory_space<vmem>>, vector<8x4xi32>
    %1 = tpu.iota {dimensions = array<i32: 1>} : vector<8x64xi32>
    %2 = vector.extract_strided_slice %0 {offsets = [0, 0], sizes = [8, 1], strides = [1, 1]} : vector<8x4xi32> to vector<8x1xi32>
    %3 = vector.broadcast %2 : vector<8x1xi32> to vector<8x64xi32>
    %4 = arith.cmpi eq, %1, %3 : vector<8x64xi32>
    %5 = vector.extract_strided_slice %0 {offsets = [0, 1], sizes = [8, 1], strides = [1, 1]} : vector<8x4xi32> to vector<8x1xi32>
    %c16_i32 = arith.constant 16 : i32
    %6 = vector.broadcast %c16_i32 : i32 to vector<8x1xi32>
    %7 = arith.addi %5, %6 : vector<8x1xi32>
    %8 = vector.broadcast %7 : vector<8x1xi32> to vector<8x64xi32>
    %9 = arith.cmpi eq, %1, %8 : vector<8x64xi32>
    %10 = arith.ori %4, %9 : vector<8x64xi1>
    %11 = vector.extract_strided_slice %0 {offsets = [0, 2], sizes = [8, 1], strides = [1, 1]} : vector<8x4xi32> to vector<8x1xi32>
    %c32_i32 = arith.constant 32 : i32
    %12 = vector.broadcast %c32_i32 : i32 to vector<8x1xi32>
    %13 = arith.addi %11, %12 : vector<8x1xi32>
    %14 = vector.broadcast %13 : vector<8x1xi32> to vector<8x64xi32>
    %15 = arith.cmpi eq, %1, %14 : vector<8x64xi32>
    %16 = arith.ori %10, %15 : vector<8x64xi1>
    %17 = vector.extract_strided_slice %0 {offsets = [0, 3], sizes = [8, 1], strides = [1, 1]} : vector<8x4xi32> to vector<8x1xi32>
    %c48_i32 = arith.constant 48 : i32
    %18 = vector.broadcast %c48_i32 : i32 to vector<8x1xi32>
    %19 = arith.addi %17, %18 : vector<8x1xi32>
    %20 = vector.broadcast %19 : vector<8x1xi32> to vector<8x64xi32>
    %21 = arith.cmpi eq, %1, %20 : vector<8x64xi32>
    %22 = arith.ori %16, %21 : vector<8x64xi1>
    %23 = arith.extui %22 : vector<8x64xi1> to vector<8x64xi32>
    %24 = arith.sitofp %23 : vector<8x64xi32> to vector<8x64xf32>
    %c0_1 = arith.constant 0 : index
    %c0_2 = arith.constant 0 : index
    %25 = vector.load %arg3[%c0_1, %c0_2] : memref<64x128xf32, #tpu.memory_space<vmem>>, vector<64x128xf32>
    %cst = arith.constant dense<0.000000e+00> : vector<8x128xf32>
    %26 = tpu.matmul %24, %25, %cst {dimension_numbers = #tpu.dot_dimension_numbers<[1], [0], [0], [1], [0, 0, 1, 1], [], []>} : vector<8x64xf32>, vector<64x128xf32>, vector<8x128xf32> -> vector<8x128xf32>
    %c0_3 = arith.constant 0 : index
    %c0_4 = arith.constant 0 : index
    %27 = vector.load %arg2[%c0_3, %c0_4] : memref<8x128xf32, #tpu.memory_space<vmem>>, vector<8x128xf32>
    %28 = arith.addf %27, %26 : vector<8x128xf32>
    %c0_5 = arith.constant 0 : index
    %c0_6 = arith.constant 0 : index
    %29 = vector.load %arg4[%c0_5, %c0_6] : memref<8x128xf32, #tpu.memory_space<vmem>>, vector<8x128xf32>
    tpu.vector_store %arg4[%c0_5, %c0_6], %28 {strides = array<i32>} : memref<8x128xf32, #tpu.memory_space<vmem>>, vector<8x128xf32>,
    return
  }
  func.func @transform_0(%arg0: i32) -> (i32, i32) {
    %c0_i32 = arith.constant 0 : i32
    %c0_i32_0 = arith.constant 0 : i32
    return %arg0, %c0_i32 : i32, i32
  }
  func.func @transform_1(%arg0: i32) -> (i32, i32) {
    %c0_i32 = arith.constant 0 : i32
    %c0_i32_0 = arith.constant 0 : i32
    return %arg0, %c0_i32 : i32, i32
  }
  func.func @transform_2(%arg0: i32) -> (i32, i32) {
    %c0_i32 = arith.constant 0 : i32
    %c0_i32_0 = arith.constant 0 : i32
    %c0_i32_1 = arith.constant 0 : i32
    return %c0_i32, %c0_i32_0 : i32, i32
  }
  func.func @transform_3(%arg0: i32) -> (i32, i32) {
    %c0_i32 = arith.constant 0 : i32
    %c0_i32_0 = arith.constant 0 : i32
    return %arg0, %c0_i32 : i32, i32
  }
}

</mosaic_0001>

<llo_original>
// kernel: tpu_custom_call.1
$region0: #{tpu_custom_call.1}
  #allocation0 [shape = 'u32[]', space=smem, size = 0x4, offset = 0x4, fixed_abs, tag = 'smem constant byte address 0x4 - core index']
  #allocation1 [shape = 'u32[144,128]{1,0:T(1,128)}', space=vmem, size = 0x12000, scoped, tag = 'internal scratch']
  %s0 = inlined_call_operand.vmem [shape: s32[8,4], index: 0, kind: input, shape index: {}]
  %s1 = inlined_call_operand.vmem [shape: f32[8,128], index: 1, kind: input, shape index: {}]
  %s2 = inlined_call_operand.hbm [shape: f32[64,128], index: 2, kind: input, shape index: {}]
  %s3 = inlined_call_operand.hbm [shape: f32[8,128], index: 3, kind: output, shape index: {}]
  %s4 = sld [smem:[#allocation0]]
  $region26: #{tpu_custom_call.1} parent=0
    _
  %s6 = ssub.s32 1, %s4
  %s7 = scalar_select 0, %s6, %s4
  $region1: #{tpu_custom_call.1} parent=0
    #allocation2 [shape = 'u8[32768]{0}', space=vmem, size = 0x8000, scoped, tag = 'input window, operand 2, single buffered']
    #allocation3 [shape = 's32[1]{0}', space=sflag, size = 0x4, scoped, tag = 'scoped memory for tpu_custom_call.1']
    #allocation4 [shape = 's32[1]{0}', space=sflag, size = 0x4, scoped, tag = 'scoped memory for tpu_custom_call.1']
    #allocation5 [shape = 'u8[4096]{0}', space=vmem, size = 0x1000, scoped, tag = 'output window, operand 0, single buffered']
    %8 = vsyncpa [#allocation3], 0
    %9 = vsyncpa [#allocation4], 0
    // Predicated region
    $region2: #{tpu_custom_call.1} parent=1 // pred_check
      _
    $region3: #{tpu_custom_call.1} parent=1 // pred_check_branch
      %11 = sbr.rel (0) target = $region5
    $region4: #{tpu_custom_call.1} parent=1 // pred_region
      _
    $region5: #{tpu_custom_call.1} parent=1 // pred_fallthru
      _
    // Predicated region
    $region6: #{tpu_custom_call.1} parent=1 // pred_check
      _
    $region7: #{tpu_custom_call.1} parent=1 // pred_check_branch
      %13 = sbr.rel (0) target = $region9
    $region8: #{tpu_custom_call.1} parent=1 // pred_region
      _
    $region9: #{tpu_custom_call.1} parent=1 // pred_fallthru
      _
    // Predicated region
    $region10: #{tpu_custom_call.1} parent=1 // pred_check
      _
    $region11: #{tpu_custom_call.1} parent=1 // pred_check_branch
      %15 = sbr.rel (0) target = $region13
    $region12: #{tpu_custom_call.1} parent=1 // pred_region
      %s17 = ssub.s32 1024, 1024
      %18 = vsyncadd [#allocation3], %s17
      %s19 = sshll.u32 [#allocation2], 4
      %s20 = int_to_ptr.vmem [resolvable:$true] %s19
      %25 = dma.hbm_to_vmem [thread:$0]  %s2, 1024, %s20, [#allocation3], 128, 128, 8
    $region13: #{tpu_custom_call.1} parent=1 // pred_fallthru
      _
    // Predicated region
    $region14: #{tpu_custom_call.1} parent=1 // pred_check
      _
    $region15: #{tpu_custom_call.1} parent=1 // pred_check_branch
      %27 = sbr.rel (0) target = $region17
    $region16: #{tpu_custom_call.1} parent=1 // pred_region
      %28 = dma.done [#allocation3], 1024
    $region17: #{tpu_custom_call.1} parent=1 // pred_fallthru
      _
    %v29 = vld [vmem:[%s0] sm:$0xff]
    %v30 = vlaneseq
    %v31 = vand.u32 %v30, 127
    %32 = vset.pattern.permute.xlu0 0
    %33 = vperm.xlu0 %32, %v29
    %v34 = vpop.permute.xlu0 %33
    %vm35 = vcmp.eq.s32.totalorder %v31, %v34
    %v36 = vadd.s32 %v29, 16
    %37 = vset.pattern.permute.xlu0 1
    %38 = vperm.xlu0 %37, %v36
    %v39 = vpop.permute.xlu0 %38
    %vm40 = vcmp.eq.s32.totalorder %v31, %v39
    %vm41 = vmor %vm35, %vm40
    %v42 = vadd.s32 %v29, 32
    %43 = vset.pattern.permute.xlu0 2
    %44 = vperm.xlu0 %43, %v42
    %v45 = vpop.permute.xlu0 %44
    %vm46 = vcmp.eq.s32.totalorder %v31, %v45
    %vm47 = vmor %vm41, %vm46
    %v48 = vadd.s32 %v29, 48
    %49 = vset.pattern.permute.xlu0 3
    %50 = vperm.xlu0 %49, %v48
    %v51 = vpop.permute.xlu0 %50
    %vm52 = vcmp.eq.s32.totalorder %v31, %v51
    %vm53 = vmor %vm47, %vm52
    %v54 = vsel %vm53, 1, 0
    %v55 = vcvt.s32.f32 %v54
    %v56 = vld [vmem:[#allocation2] sm:$0xff]
    %v57 = vld [vmem:[#allocation2 + $0x8] sm:$0xff]
    %v58 = vld [vmem:[#allocation2 + $0x10] sm:$0xff]
    %v59 = vld [vmem:[#allocation2 + $0x18] sm:$0xff]
    %v60 = vld [vmem:[#allocation2 + $0x20] sm:$0xff]
    %v61 = vld [vmem:[#allocation2 + $0x28] sm:$0xff]
    %v62 = vld [vmem:[#allocation2 + $0x30] sm:$0xff]
    %v63 = vld [vmem:[#allocation2 + $0x38] sm:$0xff]
    %vm64 = vcmask 523264
    %v66 = vsel %vm64, %v55, 0
    %68 = vmatprep.subr.mxu0 0.0
    %69 = vmatpush1.msra.mxu0 %v56
    %70 = vmatprep.subr.mxu0 0.0
    %71 = vmatpush1.msra.mxu0 %v57
    %72 = vmatprep.subr.mxu0 0.0
    %73 = vmatpush1.msra.mxu0 %v58
    %74 = vmatprep.subr.mxu0 0.0
    %75 = vmatpush1.msra.mxu0 %v59
    %76 = vmatprep.subr.mxu0 0.0
    %77 = vmatpush1.msra.mxu0 %v60
    %78 = vmatprep.subr.mxu0 0.0
    %79 = vmatpush1.msra.mxu0 %v61
    %80 = vmatprep.subr.mxu0 0.0
    %81 = vmatpush1.msra.mxu0 %v62
    %82 = vmatprep.subr.mxu0 0.0
    %83 = vmatpush1.msra.mxu0 %v63
    %84 = vmatprep.subr.mxu0 0.0
    %85 = vmatpush1.msra.mxu0 0.0
    %86 = vmatprep.subr.mxu0 0.0
    %87 = vmatpush1.msra.mxu0 0.0
    %88 = vmatprep.subr.mxu0 0.0
    %89 = vmatpush1.msra.mxu0 0.0
    %90 = vmatprep.subr.mxu0 0.0
    %91 = vmatpush1.msra.mxu0 0.0
    %92 = vmatprep.subr.mxu0 0.0
    %93 = vmatpush1.msra.mxu0 0.0
    %94 = vmatprep.subr.mxu0 0.0
    %95 = vmatpush1.msra.mxu0 0.0
    %96 = vmatprep.subr.mxu0 0.0
    %97 = vmatpush1.msra.mxu0 0.0
    %98 = vmatprep.subr.mxu0 0.0
    %99 = vmatpush1.msra.mxu0 0.0
    %100 = vmatprep.subr.mxu0 0.0
    %101 = vmatpush1.msra.mxu0 0.0
    %102 = vmatprep.subr.mxu0 0.0
    %103 = vmatpush1.msra.mxu0 0.0
    %104 = vmatprep.subr.mxu0 0.0
    %105 = vmatpush1.msra.mxu0 0.0
    %106 = vmatprep.subr.mxu0 0.0
    %107 = vmatpush1.msra.mxu0 0.0
    %108 = vmatprep.subr.mxu0 0.0
    %109 = vmatpush1.msra.mxu0 0.0
    %110 = vmatprep.subr.mxu0 0.0
    %111 = vmatpush1.msra.mxu0 0.0
    %112 = vmatprep.subr.mxu0 0.0
    %113 = vmatpush1.msra.mxu0 0.0
    %114 = vmatprep.subr.mxu0 0.0
    %115 = vmatpush1.msra.mxu0 0.0
    %116 = vmatprep.subr.mxu0 0.0
    %117 = vmatpush1.msra.mxu0 0.0
    %118 = vmatprep.subr.mxu0 0.0
    %119 = vmatpush1.msra.mxu0 0.0
    %120 = vmatprep.subr.mxu0 0.0
    %121 = vmatpush1.msra.mxu0 0.0
    %122 = vmatprep.subr.mxu0 0.0
    %123 = vmatpush1.msra.mxu0 0.0
    %124 = vmatprep.subr.mxu0 0.0
    %125 = vmatpush1.msra.mxu0 0.0
    %126 = vmatprep.subr.mxu0 0.0
    %127 = vmatpush1.msra.mxu0 0.0
    %128 = vmatprep.subr.mxu0 0.0
    %129 = vmatpush1.msra.mxu0 0.0
    %130 = vmatprep.subr.mxu0 0.0
    %131 = vmatpush1.msra.mxu0 0.0
    %132 = vmatprep.mubr.f32.mxu0 0.0
    %133 = vmatmul.mubr.f32.gmra.mrb[0].mxu0 %v66
    %v134 = vpop.f32.mrb[0].mxu0
    %v135 = vadd.f32 0.0, %v134
    %v136 = vpop.f32.mrb[0].mxu0
    %137 = vdwg.mxu0
    %v138 = vld [vmem:[%s1] sm:$0xff]
    %v139 = vadd.f32 %v138, %v135
    %140 = vst [vmem:[#allocation5] sm:$0xff] %v139
    // Predicated region
    $region18: #{tpu_custom_call.1} parent=1 // pred_check
      _
    $region19: #{tpu_custom_call.1} parent=1 // pred_check_branch
      %142 = sbr.rel (0) target = $region21
    $region20: #{tpu_custom_call.1} parent=1 // pred_region
      %s144 = ssub.s32 128, 128
      %145 = vsyncadd [#allocation4], %s144
      %s147 = sshll.u32 [#allocation5], 4
      %s148 = int_to_ptr.vmem [resolvable:$true] %s147
      %150 = dma.vmem_to_hbm [thread:$0]  %s148, 128, %s3, [#allocation4]
    $region21: #{tpu_custom_call.1} parent=1 // pred_fallthru
      _
    // Predicated region
    $region22: #{tpu_custom_call.1} parent=1 // pred_check
      _
    $region23: #{tpu_custom_call.1} parent=1 // pred_check_branch
      %152 = sbr.rel (0) target = $region25
    $region24: #{tpu_custom_call.1} parent=1 // pred_region
      %153 = dma.done [#allocation4], 128
    $region25: #{tpu_custom_call.1} parent=1 // pred_fallthru
      _
    %154 = vsyncpa [#allocation3], 1
    %155 = vsyncpa [#allocation4], 1

</llo_original>
